<compile_context>
chip_gen: v7x
topology: tpu7x:2x2x1
jax: 0.10.0
libtpu: 0.0.40
codegen_flags: <defaults>
</compile_context>

<pallas_src>
import functools

import jax
import jax.numpy as jnp
from jax import lax
from jax.experimental import pallas as pl
from jax.experimental.pallas import tpu as pltpu


def _cosine_diag_kernel(c1_ref, c2_ref, o_ref, *, inv_temp, n_valid, tile_m):
    i = pl.program_id(0)

    @pl.when(i == 0)
    def _():
        o_ref[...] = jnp.zeros_like(o_ref)

    c1 = c1_ref[...].astype(jnp.float32)
    c2 = c2_ref[...].astype(jnp.float32)

    # Per-row reductions over the lane (embedding) axis: VPU multiplies plus
    # three lane reduces per row.  No matmul, no transpose, no N x N epilogue.
    s = jnp.sum(c1 * c2, axis=-1, keepdims=True)   # (tile_m, 1)  <c1_i, c2_i>
    a = jnp.sum(c1 * c1, axis=-1, keepdims=True)   # ||c1_i||^2
    b = jnp.sum(c2 * c2, axis=-1, keepdims=True)   # ||c2_i||^2

    # rsqrt(max(||x||^2, eps^2)) == 1 / max(||x||, eps)  (F.normalize eps=1e-12).
    # rsqrt lowers to the EUP slot instead of per-element VALU divides.
    eps2 = jnp.float32(1e-24)
    cos = s * lax.rsqrt(jnp.maximum(a, eps2)) * lax.rsqrt(jnp.maximum(b, eps2))

    # Mask rows beyond the diagonal length (padding of a partial last block).
    rows = i * tile_m + lax.broadcasted_iota(jnp.int32, cos.shape, 0)
    cos = jnp.where(rows < n_valid, cos, jnp.float32(0.0))

    # Accumulate into the resident output block (same block index every step).
    o_ref[...] += jnp.sum(cos, keepdims=True)

    @pl.when(i == pl.num_programs(0) - 1)
    def _():
        o_ref[...] = o_ref[...] * jnp.float32(inv_temp)


def _choose_tile_m(n_rows, d, itemsize, vmem_budget_bytes=8 << 20, cap=1024):
    # 2 inputs x 2 pipeline buffers of (tile_m, d) must fit the budget; 8 MiB
    # stays well under every generation's default scoped-VMEM limit
    # (v5e 16 MiB, v6e 32 MiB, v7x 32 MiB of 64 MiB physical).
    max_rows = max(vmem_budget_bytes // (4 * d * itemsize), 8)
    tm = int(min(n_rows, max_rows, cap))
    if tm < n_rows:
        tm = max((tm // 8) * 8, 8)   # tiled path: keep block rows sublane-aligned
    return tm


def cosine_classifier(concept1, concept2, temp=1.0, scale=True, tile_m=None):
    """Pallas implementation of CosineClassifier.forward.

    concept1: (bs, emb_dim), concept2: (n_class, emb_dim). Returns a scalar.
    """
    bs, d = concept1.shape
    n_class, d2 = concept2.shape
    assert d == d2, "embedding dims must match"

    # torch.diagonal of the (bs, n_class) product only touches the first
    # min(bs, n_class) rows of each operand (identity slice when bs==n_class).
    n_diag = min(bs, n_class)
    c1 = concept1[:n_diag]
    c2 = concept2[:n_diag]

    itemsize = jnp.dtype(concept1.dtype).itemsize
    if tile_m is None:
        tm = _choose_tile_m(n_diag, d, itemsize)
    else:
        tm = int(tile_m)
        if tm < n_diag:
            tm = max((tm // 8) * 8, 8)
        else:
            tm = n_diag
    grid_m = pl.cdiv(n_diag, tm)

    inv_temp = (1.0 / float(temp)) if scale else 1.0

    out = pl.pallas_call(
        functools.partial(
            _cosine_diag_kernel, inv_temp=inv_temp, n_valid=n_diag, tile_m=tm
        ),
        out_shape=jax.ShapeDtypeStruct((1, 1), jnp.float32),
        grid=(grid_m,),
        in_specs=[
            pl.BlockSpec((tm, d), lambda i: (i, 0)),
            pl.BlockSpec((tm, d), lambda i: (i, 0)),
        ],
        out_specs=pl.BlockSpec((1, 1), lambda i: (0, 0)),
        compiler_params=pltpu.CompilerParams(
            dimension_semantics=("arbitrary",),   # row axis is a reduction
        ),
    )(c1, c2)
    return out[0, 0]


if __name__ == "__main__":
    key = jax.random.PRNGKey(0)
    k1, k2, k3, k4 = jax.random.split(key, 4)

    def ref(c1, c2, temp, scale):
        c1n = c1 / jnp.maximum(jnp.linalg.norm(c1, axis=-1, keepdims=True), 1e-12)
        c2n = c2 / jnp.maximum(jnp.linalg.norm(c2, axis=-1, keepdims=True), 1e-12)
        pred = c1n @ c2n.T
        if scale:
            pred = pred / temp
        return jnp.sum(jnp.diagonal(pred))

    # Base case: square inputs, single block.
    bs, n_class, emb_dim = 8, 8, 32
    c1 = jax.random.normal(k1, (bs, emb_dim), dtype=jnp.float32)
    c2 = jax.random.normal(k2, (n_class, emb_dim), dtype=jnp.float32)
    got = jax.block_until_ready(cosine_classifier(c1, c2, temp=2.0, scale=True))
    want = ref(c1, c2, 2.0, True)
    assert jnp.allclose(got, want, atol=1e-4, rtol=1e-4), (got, want)

    # Tiled path with a partial (masked) last block: 20 rows, tile_m=8 -> grid=3.
    c1b = jax.random.normal(k3, (20, emb_dim), dtype=jnp.float32)
    c2b = jax.random.normal(k4, (20, emb_dim), dtype=jnp.float32)
    got_b = jax.block_until_ready(
        cosine_classifier(c1b, c2b, temp=1.0, scale=True, tile_m=8)
    )
    want_b = ref(c1b, c2b, 1.0, True)
    assert jnp.allclose(got_b, want_b, atol=1e-4, rtol=1e-4), (got_b, want_b)

    # Rectangular case (bs != n_class): diagonal length is min(bs, n_class).
    got_c = jax.block_until_ready(cosine_classifier(c1, c2b, temp=1.0, scale=False))
    want_c = ref(c1, c2b, 1.0, False)
    assert jnp.allclose(got_c, want_c, atol=1e-4, rtol=1e-4), (got_c, want_c)

    print("KERNEL_OK")
</pallas_src>

<mosaic_0001>
module attributes {stable_mosaic.version = 11 : i64} {
  func.func @_cosine_diag_kernel(%arg0: i32, %arg1: memref<8x32xf32, #tpu.memory_space<vmem>>, %arg2: memref<8x32xf32, #tpu.memory_space<vmem>>, %arg3: memref<1x1xf32, #tpu.memory_space<vmem>>) attributes {dimension_semantics = [#tpu.dimension_semantics<arbitrary>], iteration_bounds = array<i64: 1>, scalar_prefetch = 0 : i64, scratch_operands = 0 : i64, tpu.core_type = #tpu.core_type<tc>, window_params = [{transform_indices = @transform_0, window_bounds = array<i64: 8, 32>}, {transform_indices = @transform_1, window_bounds = array<i64: 8, 32>}, {pipeline_mode = #tpu.pipeline_mode<synchronous>, transform_indices = @transform_2, window_bounds = array<i64: 1, 1>}]} {
    %c0_i32 = arith.constant 0 : i32
    %0 = arith.cmpi eq, %arg0, %c0_i32 : i32
    %1 = arith.extui %0 : i1 to i32
    %c0_i32_0 = arith.constant 0 : i32
    %2 = arith.cmpi ne, %1, %c0_i32_0 : i32
    scf.if %2 {
      %cst_17 = arith.constant 0.000000e+00 : f32
      %41 = vector.broadcast %cst_17 : f32 to vector<1x1xf32>
      %c0_18 = arith.constant 0 : index
      %c0_19 = arith.constant 0 : index
      %42 = vector.load %arg3[%c0_18, %c0_19] : memref<1x1xf32, #tpu.memory_space<vmem>>, vector<1x1xf32>
      tpu.vector_store %arg3[%c0_18, %c0_19], %41 {strides = array<i32>} : memref<1x1xf32, #tpu.memory_space<vmem>>, vector<1x1xf32>,
    } else {
    }
    %c0 = arith.constant 0 : index
    %c0_1 = arith.constant 0 : index
    %3 = vector.load %arg1[%c0, %c0_1] : memref<8x32xf32, #tpu.memory_space<vmem>>, vector<8x32xf32>
    %c0_2 = arith.constant 0 : index
    %c0_3 = arith.constant 0 : index
    %4 = vector.load %arg2[%c0_2, %c0_3] : memref<8x32xf32, #tpu.memory_space<vmem>>, vector<8x32xf32>
    %5 = arith.mulf %3, %4 : vector<8x32xf32>
    %cst = arith.constant dense<0.000000e+00> : vector<8xf32>
    %6 = vector.multi_reduction <add>, %5, %cst [1] : vector<8x32xf32> to vector<8xf32>
    %7 = vector.shape_cast %6 : vector<8xf32> to vector<8x1xf32>
    %8 = arith.mulf %3, %3 : vector<8x32xf32>
    %cst_4 = arith.constant dense<0.000000e+00> : vector<8xf32>
    %9 = vector.multi_reduction <add>, %8, %cst_4 [1] : vector<8x32xf32> to vector<8xf32>
    %10 = vector.shape_cast %9 : vector<8xf32> to vector<8x1xf32>
    %11 = arith.mulf %4, %4 : vector<8x32xf32>
    %cst_5 = arith.constant dense<0.000000e+00> : vector<8xf32>
    %12 = vector.multi_reduction <add>, %11, %cst_5 [1] : vector<8x32xf32> to vector<8xf32>
    %13 = vector.shape_cast %12 : vector<8xf32> to vector<8x1xf32>
    %cst_6 = arith.constant 1.000000e-24 : f32
    %14 = vector.broadcast %cst_6 : f32 to vector<8x1xf32>
    %15 = arith.maximumf %10, %14 : vector<8x1xf32>
    %16 = math.rsqrt %15 : vector<8x1xf32>
    %17 = arith.mulf %7, %16 : vector<8x1xf32>
    %cst_7 = arith.constant 1.000000e-24 : f32
    %18 = vector.broadcast %cst_7 : f32 to vector<8x1xf32>
    %19 = arith.maximumf %13, %18 : vector<8x1xf32>
    %20 = math.rsqrt %19 : vector<8x1xf32>
    %21 = arith.mulf %17, %20 : vector<8x1xf32>
    %c8_i32 = arith.constant 8 : i32
    %22 = arith.muli %arg0, %c8_i32 : i32
    %23 = tpu.iota {dimensions = array<i32: 0>} : vector<8x1xi32>
    %24 = vector.broadcast %22 : i32 to vector<8x1xi32>
    %25 = arith.addi %24, %23 : vector<8x1xi32>
    %c8_i32_8 = arith.constant 8 : i32
    %26 = vector.broadcast %c8_i32_8 : i32 to vector<8x1xi32>
    %27 = arith.cmpi slt, %25, %26 : vector<8x1xi32>
    %cst_9 = arith.constant 0.000000e+00 : f32
    %28 = vector.broadcast %cst_9 : f32 to vector<8x1xf32>
    %29 = arith.select %27, %21, %28 : vector<8x1xi1>, vector<8x1xf32>
    %c0_10 = arith.constant 0 : index
    %c0_11 = arith.constant 0 : index
    %30 = vector.load %arg3[%c0_10, %c0_11] : memref<1x1xf32, #tpu.memory_space<vmem>>, vector<1x1xf32>
    %31 = vector.shape_cast %29 : vector<8x1xf32> to vector<1x8x1xf32>
    %cst_12 = arith.constant dense<0.000000e+00> : vector<1xf32>
    %32 = vector.multi_reduction <add>, %31, %cst_12 [1, 2] : vector<1x8x1xf32> to vector<1xf32>
    %33 = vector.shape_cast %32 : vector<1xf32> to vector<1x1x1xf32>
    %34 = vector.extract %33[0, 0, 0] : f32 from vector<1x1x1xf32>
    %35 = vector.broadcast %34 : f32 to vector<1x1xf32>
    %36 = arith.addf %30, %35 : vector<1x1xf32>
    %c0_13 = arith.constant 0 : index
    %c0_14 = arith.constant 0 : index
    %37 = vector.load %arg3[%c0_13, %c0_14] : memref<1x1xf32, #tpu.memory_space<vmem>>, vector<1x1xf32>
    tpu.vector_store %arg3[%c0_13, %c0_14], %36 {strides = array<i32>} : memref<1x1xf32, #tpu.memory_space<vmem>>, vector<1x1xf32>,
    %c0_i32_15 = arith.constant 0 : i32
    %38 = arith.cmpi eq, %arg0, %c0_i32_15 : i32
    %39 = arith.extui %38 : i1 to i32
    %c0_i32_16 = arith.constant 0 : i32
    %40 = arith.cmpi ne, %39, %c0_i32_16 : i32
    scf.if %40 {
      %c0_17 = arith.constant 0 : index
      %c0_18 = arith.constant 0 : index
      %41 = vector.load %arg3[%c0_17, %c0_18] : memref<1x1xf32, #tpu.memory_space<vmem>>, vector<1x1xf32>
      %cst_19 = arith.constant 5.000000e-01 : f32
      %42 = vector.broadcast %cst_19 : f32 to vector<1x1xf32>
      %43 = arith.mulf %41, %42 : vector<1x1xf32>
      %c0_20 = arith.constant 0 : index
      %c0_21 = arith.constant 0 : index
      %44 = vector.load %arg3[%c0_20, %c0_21] : memref<1x1xf32, #tpu.memory_space<vmem>>, vector<1x1xf32>
      tpu.vector_store %arg3[%c0_20, %c0_21], %43 {strides = array<i32>} : memref<1x1xf32, #tpu.memory_space<vmem>>, vector<1x1xf32>,
    } else {
    }
    return
  }
  func.func @transform_0(%arg0: i32) -> (i32, i32) {
    %c0_i32 = arith.constant 0 : i32
    %c0_i32_0 = arith.constant 0 : i32
    return %arg0, %c0_i32 : i32, i32
  }
  func.func @transform_1(%arg0: i32) -> (i32, i32) {
    %c0_i32 = arith.constant 0 : i32
    %c0_i32_0 = arith.constant 0 : i32
    return %arg0, %c0_i32 : i32, i32
  }
  func.func @transform_2(%arg0: i32) -> (i32, i32) {
    %c0_i32 = arith.constant 0 : i32
    %c0_i32_0 = arith.constant 0 : i32
    %c0_i32_1 = arith.constant 0 : i32
    return %c0_i32, %c0_i32_0 : i32, i32
  }
}

</mosaic_0001>

<llo_original>
// kernel: tpu_custom_call.1
$region0: #{tpu_custom_call.1}
  #allocation0 [shape = 'u32[]', space=smem, size = 0x4, offset = 0x4, fixed_abs, tag = 'smem constant byte address 0x4 - core index']
  #allocation1 [shape = 'u32[144,128]{1,0:T(1,128)}', space=vmem, size = 0x12000, scoped, tag = 'internal scratch']
  %s0 = inlined_call_operand.hbm [shape: f32[8,32], index: 0, kind: input, shape index: {}]
  %s1 = inlined_call_operand.hbm [shape: f32[8,32], index: 1, kind: input, shape index: {}]
  %s2 = inlined_call_operand.hbm [shape: f32[1,1], index: 2, kind: output, shape index: {}]
  %s3 = sld [smem:[#allocation0]]
  $region34: #{tpu_custom_call.1} parent=0
    _
  %s5 = ssub.s32 1, %s3
  %s6 = scalar_select 0, %s5, %s3
  $region1: #{tpu_custom_call.1} parent=0
    #allocation2 [shape = 'u8[4096]{0}', space=vmem, size = 0x1000, scoped, tag = 'input window, operand 0, single buffered']
    #allocation3 [shape = 's32[1]{0}', space=sflag, size = 0x4, scoped, tag = 'scoped memory for tpu_custom_call.1']
    #allocation4 [shape = 's32[1]{0}', space=sflag, size = 0x4, scoped, tag = 'scoped memory for tpu_custom_call.1']
    #allocation5 [shape = 'u8[4096]{0}', space=vmem, size = 0x1000, scoped, tag = 'input window, operand 1, single buffered']
    #allocation6 [shape = 's32[1]{0}', space=sflag, size = 0x4, scoped, tag = 'scoped memory for tpu_custom_call.1']
    #allocation7 [shape = 'u8[512]{0}', space=vmem, size = 0x400, scoped, tag = 'output window, operand 0, single buffered']
    %7 = vsyncpa [#allocation3], 0
    %8 = vsyncpa [#allocation6], 0
    %9 = vsyncpa [#allocation4], 0
    // Predicated region
    $region2: #{tpu_custom_call.1} parent=1 // pred_check
      _
    $region3: #{tpu_custom_call.1} parent=1 // pred_check_branch
      %11 = sbr.rel (0) target = $region5
    $region4: #{tpu_custom_call.1} parent=1 // pred_region
      %s13 = ssub.s32 128, 128
      %14 = vsyncadd [#allocation3], %s13
      %s16 = sshll.u32 [#allocation2], 4
      %s17 = int_to_ptr.vmem [resolvable:$true] %s16
      %19 = dma.hbm_to_vmem [thread:$0]  %s0, 128, %s17, [#allocation3]
    $region5: #{tpu_custom_call.1} parent=1 // pred_fallthru
      _
    // Predicated region
    $region6: #{tpu_custom_call.1} parent=1 // pred_check
      _
    $region7: #{tpu_custom_call.1} parent=1 // pred_check_branch
      %21 = sbr.rel (0) target = $region9
    $region8: #{tpu_custom_call.1} parent=1 // pred_region
      %s23 = ssub.s32 128, 128
      %24 = vsyncadd [#allocation6], %s23
      %s26 = sshll.u32 [#allocation5], 4
      %s27 = int_to_ptr.vmem [resolvable:$true] %s26
      %29 = dma.hbm_to_vmem [thread:$0]  %s1, 128, %s27, [#allocation6]
    $region9: #{tpu_custom_call.1} parent=1 // pred_fallthru
      _
    // Predicated region
    $region10: #{tpu_custom_call.1} parent=1 // pred_check
      _
    $region11: #{tpu_custom_call.1} parent=1 // pred_check_branch
      %31 = sbr.rel (0) target = $region13
    $region12: #{tpu_custom_call.1} parent=1 // pred_region
      %32 = dma.done [#allocation3], 128
    $region13: #{tpu_custom_call.1} parent=1 // pred_fallthru
      _
    // Predicated region
    $region14: #{tpu_custom_call.1} parent=1 // pred_check
      _
    $region15: #{tpu_custom_call.1} parent=1 // pred_check_branch
      %34 = sbr.rel (0) target = $region17
    $region16: #{tpu_custom_call.1} parent=1 // pred_region
      %35 = dma.done [#allocation6], 128
    $region17: #{tpu_custom_call.1} parent=1 // pred_fallthru
      _
    %p36 = scmp.eq.s32.totalorder 0, 0
    // Predicated region
    $region18: #{tpu_custom_call.1} parent=1 // pred_check
      %p37 = pneg %p36
    $region19: #{tpu_custom_call.1} parent=1 // pred_check_branch
      %39 = sbr.rel (%p37) target = $region21
    $region20: #{tpu_custom_call.1} parent=1 // pred_region
      %vm40 = vcmask 0
      %41 = vst.msk [vmem:[#allocation7] sm:$0x1] %vm40, 0.0
    $region21: #{tpu_custom_call.1} parent=1 // pred_fallthru
      _
    %v42 = vld [vmem:[#allocation2] sm:$0xff]
    %v43 = vld [vmem:[#allocation5] sm:$0xff]
    %v44 = vmul.f32 %v42, %v43
    %vm45 = vcmask 261120
    %v46 = vsel %vm45, %v44, 0.0
    %47 = vadd.xlane.f32.xlu0 %v46
    %v48 = vpop.xlane.xlu0 %47
    %v49 = vmul.f32 %v42, %v42
    %v50 = vsel %vm45, %v49, 0.0
    %51 = vadd.xlane.f32.xlu0 %v50
    %v52 = vpop.xlane.xlu0 %51
    %v53 = vmul.f32 %v43, %v43
    %v54 = vsel %vm45, %v53, 0.0
    %55 = vadd.xlane.f32.xlu0 %v54
    %v56 = vpop.xlane.xlu0 %55
    %v57 = vmax.f32 %v52, 1e-24
    %v58 = vrsqrt.pop %v57
    %v59 = vmul.f32 %v48, %v58
    %v60 = vmax.f32 %v56, 1e-24
    %v61 = vrsqrt.pop %v60
    %v62 = vmul.f32 %v59, %v61
    %s63 = smul.u32 0, 8
    %v64 = vlaneseq
    %v65 = vshrl.u32 %v64, 7
    %v66 = vstv %s63
    %v67 = vadd.s32 %v66, %v65
    %vm68 = vcmp.lt.s32.totalorder %v67, 8
    %v69 = vsel %vm68, %v62, 0.0
    %v70 = vld [vmem:[#allocation7] sm:$0x1]
    %vm71 = vcmask 7168
    %v72 = vsel %vm71, %v69, 0.0
    %73 = vadd.xlane.f32.xlu0 %v72
    %v74 = vpop.xlane.xlu0 %73
    %v75 = vrot.slane %v74, 4
    %v76 = vadd.f32 %v74, %v75
    %v77 = vrot.slane %v76, 2
    %v78 = vadd.f32 %v76, %v77
    %v79 = vrot.slane %v78, 1
    %v80 = vadd.f32 %v78, %v79
    %s81 = vtos %v80
    %v82 = vstv %s81
    %v83 = vadd.f32 %v70, %v82
    %vm84 = vcmask 0
    %85 = vst.msk [vmem:[#allocation7] sm:$0x1] %vm84, %v83
    // Predicated region
    $region22: #{tpu_custom_call.1} parent=1 // pred_check
      %p86 = pneg %p36
    $region23: #{tpu_custom_call.1} parent=1 // pred_check_branch
      %88 = sbr.rel (%p86) target = $region25
    $region24: #{tpu_custom_call.1} parent=1 // pred_region
      %v89 = vld [vmem:[#allocation7] sm:$0x1]
      %v90 = vmul.f32 %v89, 0.5
      %91 = vst.msk [vmem:[#allocation7] sm:$0x1] %vm84, %v90
    $region25: #{tpu_custom_call.1} parent=1 // pred_fallthru
      _
    // Predicated region
    $region26: #{tpu_custom_call.1} parent=1 // pred_check
      _
    $region27: #{tpu_custom_call.1} parent=1 // pred_check_branch
      %93 = sbr.rel (0) target = $region29
    $region28: #{tpu_custom_call.1} parent=1 // pred_region
      %s95 = ssub.s32 16, 16
      %96 = vsyncadd [#allocation4], %s95
      %s98 = sshll.u32 [#allocation7], 4
      %s99 = int_to_ptr.vmem [resolvable:$true] %s98
      %101 = dma.vmem_to_hbm [thread:$0]  %s99, 16, %s2, [#allocation4]
    $region29: #{tpu_custom_call.1} parent=1 // pred_fallthru
      _
    // Predicated region
    $region30: #{tpu_custom_call.1} parent=1 // pred_check
      _
    $region31: #{tpu_custom_call.1} parent=1 // pred_check_branch
      %103 = sbr.rel (0) target = $region33
    $region32: #{tpu_custom_call.1} parent=1 // pred_region
      %104 = dma.done [#allocation4], 16
    $region33: #{tpu_custom_call.1} parent=1 // pred_fallthru
      _
    %105 = vsyncpa [#allocation3], 1
    %106 = vsyncpa [#allocation6], 1
    %107 = vsyncpa [#allocation4], 1

</llo_original>
